<compile_context>
chip_gen: v6e
topology: v6e:2x2x1
jax: 0.10.0
libtpu: 0.0.40
codegen_flags: <defaults>
</compile_context>

<pallas_src>
import functools
import inspect

import jax
import jax.numpy as jnp
from jax.experimental import pallas as pl
from jax.experimental.pallas import tpu as pltpu


def _cdiv(a, b):
    return -(-a // b)


def _round_up(a, m):
    return _cdiv(a, m) * m


try:
    _HAS_PIPELINE_MODE = (
        hasattr(pl, "Buffered")
        and "pipeline_mode" in inspect.signature(pl.BlockSpec).parameters)
except Exception:  # pragma: no cover
    _HAS_PIPELINE_MODE = False


def _vmem_capacity_bytes():
    """Physical VMEM per core; conservative (v7x-sized) fallback if unknown."""
    try:
        return int(pltpu.get_tpu_info().vmem_capacity_bytes)
    except Exception:
        return 64 * 1024 * 1024


def _channel_attention_kernel(x_ref, w1t_ref, w2t_ref, out_ref,
                              sum_acc, max_acc,
                              *, hw_total, block_hw, n_hw_blocks, ragged):
    """Grid = (row_blocks, hw_blocks); hw is the ("arbitrary") reduction axis."""
    h = pl.program_id(1)

    @pl.when(h == 0)
    def _init():
        sum_acc[...] = jnp.zeros_like(sum_acc)
        max_acc[...] = jnp.full_like(max_acc, -jnp.inf)

    def _accumulate(x_sum, x_max):
        # Accumulate in f32 regardless of input dtype (no f32 copy hits VMEM).
        sum_acc[...] += jnp.sum(x_sum.astype(jnp.float32), axis=-1)        # (bb, C)
        max_acc[...] = jnp.maximum(max_acc[...],
                                   jnp.max(x_max, axis=-1).astype(jnp.float32))

    if not ragged:
        # Fast path: every tile is full; the mask path is never compiled.
        _accumulate(x_ref[...], x_ref[...])
    else:
        # Full tiles: unmasked accumulate (no iota / compare / select per
        # element) so the streaming loop stays DMA-bound.
        @pl.when(h < n_hw_blocks - 1)
        def _full_tile():
            x = x_ref[...]
            _accumulate(x, x)

        # Only the final tile is ragged: mask with a lane-only (1, 1, block_hw)
        # predicate computed once and reused for both the sum and the max.
        @pl.when(h == n_hw_blocks - 1)
        def _last_tile():
            x = x_ref[...]
            rem = hw_total - (n_hw_blocks - 1) * block_hw                 # static
            valid = jax.lax.broadcasted_iota(jnp.int32, (1, 1, block_hw), 2) < rem
            x_sum = jnp.where(valid, x, jnp.zeros((), dtype=x.dtype))
            x_max = jnp.where(valid, x, jnp.array(-jnp.inf, dtype=x.dtype))
            _accumulate(x_sum, x_max)

    @pl.when(h == n_hw_blocks - 1)
    def _epilogue():
        bb = sum_acc.shape[0]
        avg = sum_acc[...] * (1.0 / float(hw_total))                      # (bb, C)
        mx = max_acc[...]                                                 # (bb, C)
        pooled = jnp.concatenate([avg, mx], axis=0)                       # (2*bb, C)
        # Weights are resident VMEM blocks and only touched here (once per row).
        w1t = w1t_ref[...].astype(jnp.float32)                            # (C, Cr)
        w2t = w2t_ref[...].astype(jnp.float32)                            # (Cr, C)
        hidden = jnp.maximum(
            jnp.dot(pooled, w1t, preferred_element_type=jnp.float32), 0.0)
        o = jnp.dot(hidden, w2t, preferred_element_type=jnp.float32)      # (2*bb, C)
        out = jax.nn.sigmoid(o[:bb] + o[bb:])                             # (bb, C)
        out_ref[...] = out.astype(out_ref.dtype)


def channel_attention(x, w1, w2, *, block_hw=None, tile_budget_bytes=None):
    """CBAM channel attention.

    x:  (B, C, H, W) NCHW feature map (floating point).
    w1: (C//ratio, C)  == fc1.weight[:, :, 0, 0]
    w2: (C, C//ratio)  == fc2.weight[:, :, 0, 0]
    Returns (B, C, 1, 1), same dtype as x.
    """
    B, C, H, W = x.shape
    HW = H * W
    Cr = w1.shape[0]
    assert w1.shape == (Cr, C), w1.shape
    assert w2.shape == (C, Cr), w2.shape
    assert jnp.issubdtype(x.dtype, jnp.floating), (
        "ChannelAttention kernel expects a floating-point feature map "
        "(max pooling uses a -inf mask).")

    xf = x.reshape(B, C, HW)
    w1t = jnp.transpose(w1)            # (C, Cr): pooled @ w1t == fc1
    w2t = jnp.transpose(w2)            # (Cr, C): hidden @ w2t == fc2
    itemsize = x.dtype.itemsize

    # ---- per-generation knobs ------------------------------------------------
    vmem_cap = _vmem_capacity_bytes()
    big_vmem = vmem_cap >= (100 << 20)          # v5e / v6e: 128 MiB; v7x: 64 MiB
    lane_cap = 8192 if big_vmem else 4096       # max lanes per streamed tile
    if tile_budget_bytes is None:
        tile_budget_bytes = (24 << 20) if big_vmem else (10 << 20)
    vmem_clamp = (96 << 20) if big_vmem else (48 << 20)
    x_buf_count = 3 if _HAS_PIPELINE_MODE else 2  # requested pipeline depth for x

    # ---- row tiling: bb batch elements x all C channels per block -------------
    # bb must divide B (MLP stays per-batch-element, no ragged rows) and keep
    # the (bb, C) output block layout-legal (bb % 8 == 0 or bb == B).  Start
    # from the smallest legal bb: it maximizes n_rows (keeps v7x's two
    # TensorCores busy on the "parallel" row axis) and leaves the budget to
    # block_hw, which is what lengthens the contiguous HBM runs.
    cands = [d for d in range(1, B + 1) if B % d == 0 and (d % 8 == 0 or d == B)]
    bb = min(cands)

    # ---- spatial (lane) tiling -------------------------------------------------
    # Biggest lane-dense tile that (a) respects the per-generation lane cap and
    # (b) keeps x_buf_count buffers of the x tile inside the budget (joint
    # bb/block_hw budgeting: never silently overshoot VMEM for large C).
    bytes_per_lane = max(1, x_buf_count * bb * C * itemsize)
    lanes_budget = max(128, (tile_budget_bytes // bytes_per_lane) // 128 * 128)
    cap = max(128, min(lane_cap, lanes_budget))
    if block_hw is None:
        if HW <= cap:
            block_hw = HW                        # single tile, never ragged
        else:
            # Balance tiles so the last one is not mostly padding; a balanced
            # size that divides HW exactly also removes the mask path entirely.
            n_tiles = _cdiv(HW, cap)
            block_hw = min(cap, _round_up(_cdiv(HW, n_tiles), 128))
    else:
        block_hw = int(block_hw)
        if block_hw >= HW:
            block_hw = HW
        else:
            block_hw = min(max(128, (block_hw // 128) * 128), cap)
            if block_hw > HW:
                block_hw = HW
    n_hw = _cdiv(HW, block_hw)
    ragged = (HW % block_hw) != 0

    # If the whole spatial extent fits one tile, grow bb with leftover budget to
    # amortize per-grid-step overhead -- but never past B // 2 when a legal
    # split exists (keep n_rows >= 2 so both v7x cores get work).
    if n_hw == 1:
        grow_cands = [d for d in cands if B // d >= 2] or [bb]
        for d in sorted(grow_cands):
            if x_buf_count * d * C * block_hw * itemsize <= tile_budget_bytes:
                bb = max(bb, d)
    n_rows = B // bb

    # ---- VMEM budget: pipelined x tile + weights + scratch + output -----------
    est = (x_buf_count * bb * C * block_hw * itemsize
           + 2 * (w1t.size + w2t.size) * w1t.dtype.itemsize
           + 2 * bb * C * 4
           + 2 * bb * C * itemsize)
    vmem_limit = int(min(max(int(est * 1.25), 32 << 20), vmem_clamp))

    kernel = functools.partial(
        _channel_attention_kernel,
        hw_total=HW, block_hw=block_hw, n_hw_blocks=n_hw, ragged=ragged)

    x_index = lambda r, h: (r, 0, h)
    if _HAS_PIPELINE_MODE and n_rows * n_hw >= 3:
        # DMA-bound streaming loop: a 3rd buffer hides strided-DMA latency jitter.
        x_spec = pl.BlockSpec((bb, C, block_hw), x_index,
                              pipeline_mode=pl.Buffered(x_buf_count))
    else:
        x_spec = pl.BlockSpec((bb, C, block_hw), x_index)
    # Weights have constant index maps (fetched once, resident); their extra
    # default buffer is at most a few hundred KiB, so they are left at default
    # pipelining rather than depending on Buffered(1) support.

    out = pl.pallas_call(
        kernel,
        out_shape=jax.ShapeDtypeStruct((B, C), x.dtype),
        grid_spec=pltpu.PrefetchScalarGridSpec(
            num_scalar_prefetch=0,
            grid=(n_rows, n_hw),
            in_specs=[
                x_spec,
                pl.BlockSpec((C, Cr), lambda r, h: (0, 0)),   # resident weights
                pl.BlockSpec((Cr, C), lambda r, h: (0, 0)),
            ],
            out_specs=pl.BlockSpec((bb, C), lambda r, h: (r, 0)),
            scratch_shapes=[
                pltpu.VMEM((bb, C), jnp.float32),   # partial spatial sum
                pltpu.VMEM((bb, C), jnp.float32),   # running spatial max
            ],
        ),
        compiler_params=pltpu.CompilerParams(
            dimension_semantics=("parallel", "arbitrary"),
            vmem_limit_bytes=vmem_limit,
        ),
    )(xf, w1t, w2t)
    return out.reshape(B, C, 1, 1)


def channel_attention_ref(x, w1, w2):
    """Pure-JAX reference mirroring the PyTorch forward."""
    xf = x.astype(jnp.float32)
    avg = jnp.mean(xf, axis=(2, 3))                       # (B, C)
    mx = jnp.max(xf, axis=(2, 3))                         # (B, C)

    def mlp(p):
        h = jnp.maximum(p @ w1.astype(jnp.float32).T, 0.0)
        return h @ w2.astype(jnp.float32).T

    out = jax.nn.sigmoid(mlp(avg) + mlp(mx))
    return out[:, :, None, None].astype(x.dtype)


if __name__ == "__main__":
    # Small shapes consistent with the module: in_planes=16, ratio=8 -> hidden=2.
    B, C, ratio = 2, 16, 8
    Cr = C // ratio

    key = jax.random.PRNGKey(0)
    kx, k1, k2, kx2 = jax.random.split(key, 4)
    # Deterministic synthetic weights (match Conv2d(C, Cr, 1) / Conv2d(Cr, C, 1)).
    w1 = jax.random.normal(k1, (Cr, C), dtype=jnp.float32) * 0.2
    w2 = jax.random.normal(k2, (C, Cr), dtype=jnp.float32) * 0.2

    # Case 1: single spatial tile (H*W fits one lane-dense block; no mask compiled).
    x = jax.random.normal(kx, (B, C, 16, 16), dtype=jnp.float32)
    out = jax.block_until_ready(channel_attention(x, w1, w2))
    ref = channel_attention_ref(x, w1, w2)
    assert out.shape == (B, C, 1, 1)
    assert jnp.allclose(out, ref, atol=1e-5, rtol=1e-5), "mismatch (single tile)"

    # Case 2: multi-tile streaming path; only the final (ragged) tile is masked
    # (H*W = 324, block_hw = 128 -> 3 tiles, last one uses the lane mask).
    x2 = jax.random.normal(kx2, (B, C, 18, 18), dtype=jnp.float32)
    out2 = jax.block_until_ready(channel_attention(x2, w1, w2, block_hw=128))
    ref2 = channel_attention_ref(x2, w1, w2)
    assert out2.shape == (B, C, 1, 1)
    assert jnp.allclose(out2, ref2, atol=1e-5, rtol=1e-5), "mismatch (tiled/ragged)"

    print("KERNEL_OK")
</pallas_src>

<mosaic_0001>
module attributes {stable_mosaic.version = 11 : i64} {
  func.func @_channel_attention_kernel(%arg0: i32, %arg1: i32, %arg2: memref<2x16x256xf32, #tpu.memory_space<vmem>>, %arg3: memref<16x2xf32, #tpu.memory_space<vmem>>, %arg4: memref<2x16xf32, #tpu.memory_space<vmem>>, %arg5: memref<2x16xf32, #tpu.memory_space<vmem>>, %arg6: memref<2x16xf32, #tpu.memory_space<vmem>>, %arg7: memref<2x16xf32, #tpu.memory_space<vmem>>) attributes {dimension_semantics = [#tpu.dimension_semantics<parallel>, #tpu.dimension_semantics<arbitrary>], iteration_bounds = array<i64: 1, 1>, scalar_prefetch = 0 : i64, scratch_operands = 2 : i64, tpu.core_type = #tpu.core_type<tc>, window_params = [{transform_indices = @transform_0, window_bounds = array<i64: 2, 16, 256>}, {pipeline_mode = #tpu.pipeline_mode<synchronous>, transform_indices = @transform_1, window_bounds = array<i64: 16, 2>}, {pipeline_mode = #tpu.pipeline_mode<synchronous>, transform_indices = @transform_2, window_bounds = array<i64: 2, 16>}, {transform_indices = @transform_3, window_bounds = array<i64: 2, 16>}]} {
    %c0_i32 = arith.constant 0 : i32
    %0 = arith.cmpi eq, %arg1, %c0_i32 : i32
    %1 = arith.extui %0 : i1 to i32
    %c0_i32_0 = arith.constant 0 : i32
    %2 = arith.cmpi ne, %1, %c0_i32_0 : i32
    scf.if %2 {
      %cst_17 = arith.constant 0.000000e+00 : f32
      %16 = vector.broadcast %cst_17 : f32 to vector<2x16xf32>
      %c0_18 = arith.constant 0 : index
      %c0_19 = arith.constant 0 : index
      %17 = vector.load %arg6[%c0_18, %c0_19] : memref<2x16xf32, #tpu.memory_space<vmem>>, vector<2x16xf32>
      tpu.vector_store %arg6[%c0_18, %c0_19], %16 {strides = array<i32>} : memref<2x16xf32, #tpu.memory_space<vmem>>, vector<2x16xf32>,
      %cst_20 = arith.constant 0xFF800000 : f32
      %18 = vector.broadcast %cst_20 : f32 to vector<2x16xf32>
      %c0_21 = arith.constant 0 : index
      %c0_22 = arith.constant 0 : index
      %19 = vector.load %arg7[%c0_21, %c0_22] : memref<2x16xf32, #tpu.memory_space<vmem>>, vector<2x16xf32>
      tpu.vector_store %arg7[%c0_21, %c0_22], %18 {strides = array<i32>} : memref<2x16xf32, #tpu.memory_space<vmem>>, vector<2x16xf32>,
    } else {
    }
    %c0 = arith.constant 0 : index
    %c0_1 = arith.constant 0 : index
    %c0_2 = arith.constant 0 : index
    %3 = vector.load %arg2[%c0, %c0_1, %c0_2] : memref<2x16x256xf32, #tpu.memory_space<vmem>>, vector<2x16x256xf32>
    %c0_3 = arith.constant 0 : index
    %c0_4 = arith.constant 0 : index
    %c0_5 = arith.constant 0 : index
    %4 = vector.load %arg2[%c0_3, %c0_4, %c0_5] : memref<2x16x256xf32, #tpu.memory_space<vmem>>, vector<2x16x256xf32>
    %c0_6 = arith.constant 0 : index
    %c0_7 = arith.constant 0 : index
    %5 = vector.load %arg6[%c0_6, %c0_7] : memref<2x16xf32, #tpu.memory_space<vmem>>, vector<2x16xf32>
    %cst = arith.constant dense<0.000000e+00> : vector<2x16xf32>
    %6 = vector.multi_reduction <add>, %3, %cst [2] : vector<2x16x256xf32> to vector<2x16xf32>
    %7 = arith.addf %5, %6 : vector<2x16xf32>
    %c0_8 = arith.constant 0 : index
    %c0_9 = arith.constant 0 : index
    %8 = vector.load %arg6[%c0_8, %c0_9] : memref<2x16xf32, #tpu.memory_space<vmem>>, vector<2x16xf32>
    tpu.vector_store %arg6[%c0_8, %c0_9], %7 {strides = array<i32>} : memref<2x16xf32, #tpu.memory_space<vmem>>, vector<2x16xf32>,
    %c0_10 = arith.constant 0 : index
    %c0_11 = arith.constant 0 : index
    %9 = vector.load %arg7[%c0_10, %c0_11] : memref<2x16xf32, #tpu.memory_space<vmem>>, vector<2x16xf32>
    %cst_12 = arith.constant dense<0xFF800000> : vector<2x16xf32>
    %10 = vector.multi_reduction <maximumf>, %4, %cst_12 [2] : vector<2x16x256xf32> to vector<2x16xf32>
    %11 = arith.maximumf %9, %10 : vector<2x16xf32>
    %c0_13 = arith.constant 0 : index
    %c0_14 = arith.constant 0 : index
    %12 = vector.load %arg7[%c0_13, %c0_14] : memref<2x16xf32, #tpu.memory_space<vmem>>, vector<2x16xf32>
    tpu.vector_store %arg7[%c0_13, %c0_14], %11 {strides = array<i32>} : memref<2x16xf32, #tpu.memory_space<vmem>>, vector<2x16xf32>,
    %c0_i32_15 = arith.constant 0 : i32
    %13 = arith.cmpi eq, %arg1, %c0_i32_15 : i32
    %14 = arith.extui %13 : i1 to i32
    %c0_i32_16 = arith.constant 0 : i32
    %15 = arith.cmpi ne, %14, %c0_i32_16 : i32
    scf.if %15 {
      %c0_17 = arith.constant 0 : index
      %c0_18 = arith.constant 0 : index
      %16 = vector.load %arg6[%c0_17, %c0_18] : memref<2x16xf32, #tpu.memory_space<vmem>>, vector<2x16xf32>
      %cst_19 = arith.constant 3.906250e-03 : f32
      %17 = vector.broadcast %cst_19 : f32 to vector<2x16xf32>
      %18 = arith.mulf %16, %17 : vector<2x16xf32>
      %c0_20 = arith.constant 0 : index
      %c0_21 = arith.constant 0 : index
      %19 = vector.load %arg7[%c0_20, %c0_21] : memref<2x16xf32, #tpu.memory_space<vmem>>, vector<2x16xf32>
      %20 = tpu.concatenate %18, %19 in 0 : vector<2x16xf32>, vector<2x16xf32> -> vector<4x16xf32>
      %c0_22 = arith.constant 0 : index
      %c0_23 = arith.constant 0 : index
      %21 = vector.load %arg3[%c0_22, %c0_23] : memref<16x2xf32, #tpu.memory_space<vmem>>, vector<16x2xf32>
      %c0_24 = arith.constant 0 : index
      %c0_25 = arith.constant 0 : index
      %22 = vector.load %arg4[%c0_24, %c0_25] : memref<2x16xf32, #tpu.memory_space<vmem>>, vector<2x16xf32>
      %cst_26 = arith.constant dense<0.000000e+00> : vector<4x2xf32>
      %23 = tpu.matmul %20, %21, %cst_26 {dimension_numbers = #tpu.dot_dimension_numbers<[1], [0], [0], [1], [0, 0, 1, 1], [], []>} : vector<4x16xf32>, vector<16x2xf32>, vector<4x2xf32> -> vector<4x2xf32>
      %cst_27 = arith.constant 0.000000e+00 : f32
      %24 = vector.broadcast %cst_27 : f32 to vector<4x2xf32>
      %25 = arith.maximumf %23, %24 : vector<4x2xf32>
      %cst_28 = arith.constant dense<0.000000e+00> : vector<4x16xf32>
      %26 = tpu.matmul %25, %22, %cst_28 {dimension_numbers = #tpu.dot_dimension_numbers<[1], [0], [0], [1], [0, 0, 1, 1], [], []>} : vector<4x2xf32>, vector<2x16xf32>, vector<4x16xf32> -> vector<4x16xf32>
      %27 = vector.extract_strided_slice %26 {offsets = [0, 0], sizes = [2, 16], strides = [1, 1]} : vector<4x16xf32> to vector<2x16xf32>
      %28 = vector.extract_strided_slice %26 {offsets = [2, 0], sizes = [2, 16], strides = [1, 1]} : vector<4x16xf32> to vector<2x16xf32>
      %29 = arith.addf %27, %28 : vector<2x16xf32>
      %30 = arith.negf %29 : vector<2x16xf32>
      %31 = math.exp %30 : vector<2x16xf32>
      %cst_29 = arith.constant 1.000000e+00 : f32
      %32 = vector.broadcast %cst_29 : f32 to vector<2x16xf32>
      %33 = arith.addf %32, %31 : vector<2x16xf32>
      %34 = arith.divf %32, %33 : vector<2x16xf32>
      %c0_30 = arith.constant 0 : index
      %c0_31 = arith.constant 0 : index
      %35 = vector.load %arg5[%c0_30, %c0_31] : memref<2x16xf32, #tpu.memory_space<vmem>>, vector<2x16xf32>
      tpu.vector_store %arg5[%c0_30, %c0_31], %34 {strides = array<i32>} : memref<2x16xf32, #tpu.memory_space<vmem>>, vector<2x16xf32>,
    } else {
    }
    return
  }
  func.func @transform_0(%arg0: i32, %arg1: i32) -> (i32, i32, i32) {
    %c0_i32 = arith.constant 0 : i32
    %c0_i32_0 = arith.constant 0 : i32
    return %arg0, %c0_i32, %arg1 : i32, i32, i32
  }
  func.func @transform_1(%arg0: i32, %arg1: i32) -> (i32, i32) {
    %c0_i32 = arith.constant 0 : i32
    %c0_i32_0 = arith.constant 0 : i32
    %c0_i32_1 = arith.constant 0 : i32
    return %c0_i32, %c0_i32_0 : i32, i32
  }
  func.func @transform_2(%arg0: i32, %arg1: i32) -> (i32, i32) {
    %c0_i32 = arith.constant 0 : i32
    %c0_i32_0 = arith.constant 0 : i32
    %c0_i32_1 = arith.constant 0 : i32
    return %c0_i32, %c0_i32_0 : i32, i32
  }
  func.func @transform_3(%arg0: i32, %arg1: i32) -> (i32, i32) {
    %c0_i32 = arith.constant 0 : i32
    %c0_i32_0 = arith.constant 0 : i32
    return %arg0, %c0_i32 : i32, i32
  }
}

</mosaic_0001>

<llo_original>
// kernel: tpu_custom_call.1
$region0: #{tpu_custom_call.1}
  #allocation0 [shape = 'u32[]', space=smem, size = 0x4, offset = 0x4, fixed_abs, tag = 'smem constant byte address 0x4 - core index']
  #allocation1 [shape = 'u32[144,128]{1,0:T(1,128)}', space=vmem, size = 0x12000, scoped, tag = 'internal scratch']
  #allocation2 [shape = 'f32[2,16]{1,0:T(2,128)}', space=vmem, size = 0x400, scoped, tag = 'scratch operand']
  #allocation3 [shape = 'f32[2,16]{1,0:T(2,128)}', space=vmem, size = 0x400, scoped, tag = 'scratch operand']
  %s0 = inlined_call_operand.hbm [shape: f32[2,16,256], index: 0, kind: input, shape index: {}]
  %s1 = inlined_call_operand.vmem [shape: f32[16,2], index: 1, kind: input, shape index: {}]
  %s2 = inlined_call_operand.vmem [shape: f32[2,16], index: 2, kind: input, shape index: {}]
  %s3 = inlined_call_operand.hbm [shape: f32[2,16], index: 3, kind: output, shape index: {}]
  %s4 = sld [smem:[#allocation0]]
  $region34: #{tpu_custom_call.1} parent=0
    _
  %s6 = ssub.s32 1, %s4
  %s7 = scalar_select 0, %s6, %s4
  $region1: #{tpu_custom_call.1} parent=0
    #allocation4 [shape = 'u8[32768]{0}', space=vmem, size = 0x8000, scoped, tag = 'input window, operand 0, single buffered']
    #allocation5 [shape = 's32[1]{0}', space=sflag, size = 0x4, scoped, tag = 'scoped memory for tpu_custom_call.1']
    #allocation6 [shape = 's32[1]{0}', space=sflag, size = 0x4, scoped, tag = 'scoped memory for tpu_custom_call.1']
    #allocation7 [shape = 'u8[1024]{0}', space=vmem, size = 0x400, scoped, tag = 'output window, operand 0, single buffered']
    %8 = vsyncpa [#allocation5], 0
    %9 = vsyncpa [#allocation6], 0
    // Predicated region
    $region2: #{tpu_custom_call.1} parent=1 // pred_check
      _
    $region3: #{tpu_custom_call.1} parent=1 // pred_check_branch
      %11 = sbr.rel (0) target = $region5
    $region4: #{tpu_custom_call.1} parent=1 // pred_region
      %s13 = ssub.s32 1024, 1024
      %14 = vsyncadd [#allocation5], %s13
      %s15 = sshll.u32 [#allocation4], 4
      %s16 = int_to_ptr.vmem [resolvable:$true] %s15
      %21 = dma.hbm_to_vmem [thread:$0]  %s0, 1024, %s16, [#allocation5], 256, 256, 16
    $region5: #{tpu_custom_call.1} parent=1 // pred_fallthru
      _
    // Predicated region
    $region6: #{tpu_custom_call.1} parent=1 // pred_check
      _
    $region7: #{tpu_custom_call.1} parent=1 // pred_check_branch
      %23 = sbr.rel (0) target = $region9
    $region8: #{tpu_custom_call.1} parent=1 // pred_region
      _
    $region9: #{tpu_custom_call.1} parent=1 // pred_fallthru
      _
    // Predicated region
    $region10: #{tpu_custom_call.1} parent=1 // pred_check
      _
    $region11: #{tpu_custom_call.1} parent=1 // pred_check_branch
      %25 = sbr.rel (0) target = $region13
    $region12: #{tpu_custom_call.1} parent=1 // pred_region
      _
    $region13: #{tpu_custom_call.1} parent=1 // pred_fallthru
      _
    // Predicated region
    $region14: #{tpu_custom_call.1} parent=1 // pred_check
      _
    $region15: #{tpu_custom_call.1} parent=1 // pred_check_branch
      %27 = sbr.rel (0) target = $region17
    $region16: #{tpu_custom_call.1} parent=1 // pred_region
      %28 = dma.done [#allocation5], 1024
    $region17: #{tpu_custom_call.1} parent=1 // pred_fallthru
      _
    %p29 = scmp.eq.s32.totalorder 0, 0
    // Predicated region
    $region18: #{tpu_custom_call.1} parent=1 // pred_check
      %p30 = pneg %p29
    $region19: #{tpu_custom_call.1} parent=1 // pred_check_branch
      %32 = sbr.rel (%p30) target = $region21
    $region20: #{tpu_custom_call.1} parent=1 // pred_region
      %vm33 = vcmask 123904
      %34 = vst.msk [vmem:[#allocation2] sm:$0x3] %vm33, 0.0
      %35 = vst.msk [vmem:[#allocation3] sm:$0x3] %vm33, -inf
    $region21: #{tpu_custom_call.1} parent=1 // pred_fallthru
      _
    %v36 = vld [vmem:[#allocation4] sm:$0xff]
    %v37 = vld [vmem:[#allocation4 + $0x8] sm:$0xff]
    %v38 = vld [vmem:[#allocation4 + $0x10] sm:$0xff]
    %v39 = vld [vmem:[#allocation4 + $0x18] sm:$0xff]
    %v40 = vld [vmem:[#allocation4 + $0x20] sm:$0xff]
    %v41 = vld [vmem:[#allocation4 + $0x28] sm:$0xff]
    %v42 = vld [vmem:[#allocation4 + $0x30] sm:$0xff]
    %v43 = vld [vmem:[#allocation4 + $0x38] sm:$0xff]
    %v44 = vld [vmem:[#allocation2] sm:$0x3]
    %v45 = vadd.f32 %v36, %v37
    %46 = vadd.xlane.f32.xlu0 %v45
    %v47 = vpop.xlane.xlu0 %46
    %v48 = vadd.f32 %v38, %v39
    %49 = vadd.xlane.f32.xlu0 %v48
    %v50 = vpop.xlane.xlu0 %49
    %v51 = vadd.f32 %v40, %v41
    %52 = vadd.xlane.f32.xlu0 %v51
    %v53 = vpop.xlane.xlu0 %52
    %v54 = vadd.f32 %v42, %v43
    %55 = vadd.xlane.f32.xlu0 %v54
    %v56 = vpop.xlane.xlu0 %55
    %v61 = vlaneseq
    %v62 = vand.u32 %v61, 127
    %v63 = vlaneseq
    %v64 = vshrl.u32 %v63, 7
    %v65 = vsub.s32 %v62, %v64
    %v66 = vrot.slane %v47, %v65
    %v67 = vadd.s32 %v62, 4294967288
    %v68 = vlaneseq
    %v69 = vshrl.u32 %v68, 7
    %v70 = vsub.s32 %v67, %v69
    %v71 = vrot.slane %v50, %v70
    %vm72 = vcmask 130112
    %v73 = vsel %vm72, %v71, %v66
    %v74 = vlaneseq
    %v75 = vshrl.u32 %v74, 7
    %v76 = vsub.s32 %v62, %v75
    %v77 = vrot.slane %v53, %v76
    %v78 = vlaneseq
    %v79 = vshrl.u32 %v78, 7
    %v80 = vsub.s32 %v67, %v79
    %v81 = vrot.slane %v56, %v80
    %v82 = vsel %vm72, %v81, %v77
    %vm83 = vcmask 1041409
    %v84 = vsel %vm83, %v82, %v73
    %v86 = vadd.f32 %v44, %v84
    %vm87 = vcmask 123904
    %88 = vst.msk [vmem:[#allocation2] sm:$0x3] %vm87, %v86
    %v89 = vld [vmem:[#allocation3] sm:$0x3]
    %v90 = vmax.f32 %v36, %v37
    %91 = vmax.xlane.f32.xlu0 %v90
    %v92 = vpop.xlane.xlu0 %91
    %v93 = vmax.f32 %v38, %v39
    %94 = vmax.xlane.f32.xlu0 %v93
    %v95 = vpop.xlane.xlu0 %94
    %v96 = vmax.f32 %v40, %v41
    %97 = vmax.xlane.f32.xlu0 %v96
    %v98 = vpop.xlane.xlu0 %97
    %v99 = vmax.f32 %v42, %v43
    %100 = vmax.xlane.f32.xlu0 %v99
    %v101 = vpop.xlane.xlu0 %100
    %v106 = vlaneseq
    %v107 = vshrl.u32 %v106, 7
    %v108 = vsub.s32 %v62, %v107
    %v109 = vrot.slane %v92, %v108
    %v110 = vlaneseq
    %v111 = vshrl.u32 %v110, 7
    %v112 = vsub.s32 %v67, %v111
    %v113 = vrot.slane %v95, %v112
    %v114 = vsel %vm72, %v113, %v109
    %v115 = vlaneseq
    %v116 = vshrl.u32 %v115, 7
    %v117 = vsub.s32 %v62, %v116
    %v118 = vrot.slane %v98, %v117
    %v119 = vlaneseq
    %v120 = vshrl.u32 %v119, 7
    %v121 = vsub.s32 %v67, %v120
    %v122 = vrot.slane %v101, %v121
    %v123 = vsel %vm72, %v122, %v118
    %v124 = vsel %vm83, %v123, %v114
    %v126 = vmax.f32 %v89, %v124
    %127 = vst.msk [vmem:[#allocation3] sm:$0x3] %vm87, %v126
    // Predicated region
    $region22: #{tpu_custom_call.1} parent=1 // pred_check
      %p128 = pneg %p29
    $region23: #{tpu_custom_call.1} parent=1 // pred_check_branch
      %130 = sbr.rel (%p128) target = $region25
    $region24: #{tpu_custom_call.1} parent=1 // pred_region
      %v131 = vld [vmem:[#allocation2] sm:$0x3]
      %v132 = vmul.f32 %v131, 0.00390625
      %v133 = vld [vmem:[#allocation3] sm:$0x3]
      %v135 = vrot.slane %v133, 6
      %vm137 = vcmask 1041408
      %v138 = vsel %vm137, %v132, %v135
      %v139 = vld [vmem:[%s1] sm:$0xff]
      %v140 = vld [vmem:[%s1 + $0x8] sm:$0xff]
      %v141 = vld [vmem:[%s2] sm:$0x3]
      %vm142 = vcmask 130048
      %v144 = vsel %vm142, %v138, 0
      %146 = vmatprep.subr.mxu0 0.0
      %147 = vmatpush1.msra.mxu0 0.0
      %148 = vmatprep.subr.mxu0 0.0
      %149 = vmatpush1.msra.mxu0 0.0
      %150 = vmatprep.subr.mxu0 0.0
      %151 = vmatpush1.msra.mxu0 0.0
      %152 = vmatprep.subr.mxu0 0.0
      %153 = vmatpush1.msra.mxu0 0.0
      %154 = vmatprep.subr.mxu0 0.0
      %155 = vmatpush1.msra.mxu0 0.0
      %156 = vmatprep.subr.mxu0 0.0
      %157 = vmatpush1.msra.mxu0 0.0
      %158 = vmatprep.subr.mxu0 0.0
      %159 = vmatpush1.msra.mxu0 0.0
      %160 = vmatprep.subr.mxu0 0.0
      %161 = vmatpush1.msra.mxu0 0.0
      %162 = vmatprep.subr.mxu0 0.0
      %163 = vmatpush1.msra.mxu0 0.0
      %164 = vmatprep.subr.mxu0 0.0
      %165 = vmatpush1.msra.mxu0 0.0
      %166 = vmatprep.subr.mxu0 0.0
      %167 = vmatpush1.msra.mxu0 0.0
      %168 = vmatprep.subr.mxu0 0.0
      %169 = vmatpush1.msra.mxu0 0.0
      %170 = vmatprep.subr.mxu0 0.0
      %171 = vmatpush1.msra.mxu0 0.0
      %172 = vmatprep.subr.mxu0 0.0
      %173 = vmatpush1.msra.mxu0 0.0
      %174 = vmatprep.subr.mxu0 0.0
      %175 = vmatpush1.msra.mxu0 %v140
      %176 = vmatprep.subr.mxu0 0.0
      %177 = vmatpush1.msra.mxu0 %v139
      %178 = vmatprep.subr.mxu0 0.0
      %179 = vmatpush2.msra.mxu0 0.0
      %180 = vmatprep.subr.mxu0 0.0
      %181 = vmatpush2.msra.mxu0 0.0
      %182 = vmatprep.subr.mxu0 0.0
      %183 = vmatpush2.msra.mxu0 0.0
      %184 = vmatprep.subr.mxu0 0.0
      %185 = vmatpush2.msra.mxu0 0.0
      %186 = vmatprep.subr.mxu0 0.0
      %187 = vmatpush2.msra.mxu0 0.0
      %188 = vmatprep.subr.mxu0 0.0
      %189 = vmatpush2.msra.mxu0 0.0
      %190 = vmatprep.subr.mxu0 0.0
      %191 = vmatpush2.msra.mxu0 0.0
      %192 = vmatprep.subr.mxu0 0.0
      %193 = vmatpush2.msra.mxu0 0.0
      %194 = vmatprep.subr.mxu0 0.0
      %195 = vmatpush2.msra.mxu0 0.0
      %196 = vmatprep.subr.mxu0 0.0
      %197 = vmatpush2.msra.mxu0 0.0
      %198 = vmatprep.subr.mxu0 0.0
      %199 = vmatpush2.msra.mxu0 0.0
      %200 = vmatprep.subr.mxu0 0.0
      %201 = vmatpush2.msra.mxu0 0.0
      %202 = vmatprep.subr.mxu0 0.0
      %203 = vmatpush2.msra.mxu0 0.0
      %204 = vmatprep.subr.mxu0 0.0
      %205 = vmatpush2.msra.mxu0 0.0
      %206 = vmatprep.subr.mxu0 0.0
      %207 = vmatpush2.msra.mxu0 0.0
      %208 = vmatprep.subr.mxu0 0.0
      %209 = vmatpush2.msra.mxu0 0.0
      %210 = vmatprep.mubr.f32.mxu0 0.0
      %211 = vmatmul.mubr.f32.gmra.mxu0 %v144
      %v212 = vpop.f32.mrf.mxu0
      %v213 = vadd.f32 0.0, %v212
      %v214 = vpop.f32.mrf.mxu0
      %215 = vdwg.mxu0
      %v216 = vmax.f32 %v213, 0.0
      %vm217 = vcmask 15360
      %v219 = vsel %vm217, %v216, 0
      %v222 = vsel %vm137, %v141, 0
      %224 = vmatprep.subr.mxu0 0.0
      %225 = vmatpush1.msra.mxu0 0.0
      %226 = vmatprep.subr.mxu0 0.0
      %227 = vmatpush1.msra.mxu0 0.0
      %228 = vmatprep.subr.mxu0 0.0
      %229 = vmatpush1.msra.mxu0 0.0
      %230 = vmatprep.subr.mxu0 0.0
      %231 = vmatpush1.msra.mxu0 0.0
      %232 = vmatprep.subr.mxu0 0.0
      %233 = vmatpush1.msra.mxu0 0.0
      %234 = vmatprep.subr.mxu0 0.0
      %235 = vmatpush1.msra.mxu0 0.0
      %236 = vmatprep.subr.mxu0 0.0
      %237 = vmatpush1.msra.mxu0 0.0
      %238 = vmatprep.subr.mxu0 0.0
      %239 = vmatpush1.msra.mxu0 0.0
      %240 = vmatprep.subr.mxu0 0.0
      %241 = vmatpush1.msra.mxu0 0.0
      %242 = vmatprep.subr.mxu0 0.0
      %243 = vmatpush1.msra.mxu0 0.0
      %244 = vmatprep.subr.mxu0 0.0
      %245 = vmatpush1.msra.mxu0 0.0
      %246 = vmatprep.subr.mxu0 0.0
      %247 = vmatpush1.msra.mxu0 0.0
      %248 = vmatprep.subr.mxu0 0.0
      %249 = vmatpush1.msra.mxu0 0.0
      %250 = vmatprep.subr.mxu0 0.0
      %251 = vmatpush1.msra.mxu0 0.0
      %252 = vmatprep.subr.mxu0 0.0
      %253 = vmatpush1.msra.mxu0 0.0
      %254 = vmatprep.subr.mxu0 0.0
      %255 = vmatpush1.msra.mxu0 %v222
      %256 = vmatprep.subr.mxu0 0.0
      %257 = vmatpush2.msra.mxu0 0.0
      %258 = vmatprep.subr.mxu0 0.0
      %259 = vmatpush2.msra.mxu0 0.0
      %260 = vmatprep.subr.mxu0 0.0
      %261 = vmatpush2.msra.mxu0 0.0
      %262 = vmatprep.subr.mxu0 0.0
      %263 = vmatpush2.msra.mxu0 0.0
      %264 = vmatprep.subr.mxu0 0.0
      %265 = vmatpush2.msra.mxu0 0.0
      %266 = vmatprep.subr.mxu0 0.0
      %267 = vmatpush2.msra.mxu0 0.0
      %268 = vmatprep.subr.mxu0 0.0
      %269 = vmatpush2.msra.mxu0 0.0
      %270 = vmatprep.subr.mxu0 0.0
      %271 = vmatpush2.msra.mxu0 0.0
      %272 = vmatprep.subr.mxu0 0.0
      %273 = vmatpush2.msra.mxu0 0.0
      %274 = vmatprep.subr.mxu0 0.0
      %275 = vmatpush2.msra.mxu0 0.0
      %276 = vmatprep.subr.mxu0 0.0
      %277 = vmatpush2.msra.mxu0 0.0
      %278 = vmatprep.subr.mxu0 0.0
      %279 = vmatpush2.msra.mxu0 0.0
      %280 = vmatprep.subr.mxu0 0.0
      %281 = vmatpush2.msra.mxu0 0.0
      %282 = vmatprep.subr.mxu0 0.0
      %283 = vmatpush2.msra.mxu0 0.0
      %284 = vmatprep.subr.mxu0 0.0
      %285 = vmatpush2.msra.mxu0 0.0
      %286 = vmatprep.subr.mxu0 0.0
      %287 = vmatpush2.msra.mxu0 0.0
      %288 = vmatprep.mubr.f32.mxu0 0.0
      %289 = vmatmul.mubr.f32.gmra.mxu0 %v219
      %v290 = vpop.f32.mrf.mxu0
      %v291 = vadd.f32 0.0, %v290
      %v292 = vpop.f32.mrf.mxu0
      %293 = vdwg.mxu0
      %v295 = vrot.slane %v291, 2
      %v297 = vadd.f32 %v291, %v295
      %v298 = vxor.u32 %v297, 2147483648
      %v299 = vmul.f32 %v298, 1.442695
      %v300 = vpow.pop %v299
      %v301 = vadd.f32 %v300, 1.0
      %v302 = vrcp.pop %v301
      %v303 = vmul.f32 1.0, %v302
      %304 = vst.msk [vmem:[#allocation7] sm:$0x3] %vm87, %v303
    $region25: #{tpu_custom_call.1} parent=1 // pred_fallthru
      _
    // Predicated region
    $region26: #{tpu_custom_call.1} parent=1 // pred_check
      _
    $region27: #{tpu_custom_call.1} parent=1 // pred_check_branch
      %306 = sbr.rel (0) target = $region29
    $region28: #{tpu_custom_call.1} parent=1 // pred_region
      %s308 = ssub.s32 32, 32
      %309 = vsyncadd [#allocation6], %s308
      %s311 = sshll.u32 [#allocation7], 4
      %s312 = int_to_ptr.vmem [resolvable:$true] %s311
      %314 = dma.vmem_to_hbm [thread:$0]  %s312, 32, %s3, [#allocation6]
    $region29: #{tpu_custom_call.1} parent=1 // pred_fallthru
      _
    // Predicated region
    $region30: #{tpu_custom_call.1} parent=1 // pred_check
      _
    $region31: #{tpu_custom_call.1} parent=1 // pred_check_branch
      %316 = sbr.rel (0) target = $region33
    $region32: #{tpu_custom_call.1} parent=1 // pred_region
      %317 = dma.done [#allocation6], 32
    $region33: #{tpu_custom_call.1} parent=1 // pred_fallthru
      _
    %318 = vsyncpa [#allocation5], 1
    %319 = vsyncpa [#allocation6], 1

</llo_original>
